<compile_context>
chip_gen: v7x
topology: tpu7x:2x2x1
jax: 0.10.0
libtpu: 0.0.40
codegen_flags: <defaults>
</compile_context>

<pallas_src>
import functools

import numpy as np
import jax
import jax.numpy as jnp
from jax.experimental import pallas as pl
from jax.experimental.pallas import tpu as pltpu

LANE = 128
_SMEM = pl.BlockSpec(memory_space=pltpu.MemorySpace.SMEM)


# ----------------------------------------------------------------------------
# Layout helpers
# ----------------------------------------------------------------------------

def _plan(n, max_tr=256):
    """rows (multiple of tr), tr (multiple of 8) for a lane-dense (rows, 128) slab."""
    rows = -(-n // LANE)
    rows = ((rows + 7) // 8) * 8
    tr = min(max_tr, rows)
    rows = ((rows + tr - 1) // tr) * tr
    return rows, tr


def _to_slab(x, rows):
    """[B, C, D, H, W] -> [B, C, rows, 128] f32, zero-padded tail."""
    b, ch = x.shape[0], x.shape[1]
    n = int(np.prod(x.shape[2:]))
    flat = x.reshape(b, ch, n).astype(jnp.float32)
    pad = rows * LANE - n
    if pad:
        flat = jnp.pad(flat, ((0, 0), (0, 0), (0, pad)))
    return flat.reshape(b, ch, rows, LANE)


def _from_slab(y, spatial, n):
    """[B, CH, rows, 128] -> [B, CH, *spatial]."""
    b, ch = y.shape[0], y.shape[1]
    return y.reshape(b, ch, -1)[:, :, :n].reshape((b, ch) + tuple(spatial))


def _flatten_rows(x, rows):
    """Any array -> zero-padded lane-dense (rows, 128) f32 slab."""
    n = int(np.prod(x.shape))
    flat = x.reshape(n).astype(jnp.float32)
    pad = rows * LANE - n
    if pad:
        flat = jnp.pad(flat, (0, pad))
    return flat.reshape(rows, LANE)


# ----------------------------------------------------------------------------
# Pallas kernels
# ----------------------------------------------------------------------------

def _qsample_denoise_kernel(coef_ref, w_ref, b_ref,
                            s_ref, t_ref, n_ref,
                            xt_ref, code_ref, l1_ref,
                            *, c, n_valid, tr, lane):
    """Fused: x_t = a*T + s*N; code = tanh(W.[S,T,x_t]+b) + t_bias; L1 partials."""
    bi = pl.program_id(0)
    ri = pl.program_id(1)
    a_c = coef_ref[0, bi]
    s_c = coef_ref[1, bi]
    t_c = coef_ref[2, bi]

    # mask for zero-padded tail of the flattened volume
    row = jax.lax.broadcasted_iota(jnp.int32, (tr, lane), 0) + ri * tr
    col = jax.lax.broadcasted_iota(jnp.int32, (tr, lane), 1)
    mask = ((row * lane + col) < n_valid).astype(jnp.float32)

    xts = []
    for ci in range(c):
        xt_ci = a_c * t_ref[0, ci] + s_c * n_ref[0, ci]
        xt_ref[0, ci] = xt_ci
        xts.append(xt_ci)

    l1_acc = jnp.zeros((tr, lane), jnp.float32)
    for co in range(c):
        acc = jnp.zeros((tr, lane), jnp.float32) + b_ref[0, co]
        for ci in range(c):
            acc = acc + w_ref[ci, co] * s_ref[0, ci]
            acc = acc + w_ref[c + ci, co] * t_ref[0, ci]
            acc = acc + w_ref[2 * c + ci, co] * xts[ci]
        code_co = jnp.tanh(acc) + t_c
        code_ref[0, co] = code_co
        l1_acc = l1_acc + jnp.abs(n_ref[0, co] - code_co) * mask

    # per-block (8, 128) partial tile (sublane-group sums only; final sum in wrapper)
    part = jnp.zeros((8, lane), jnp.float32)
    for g in range(tr // 8):
        part = part + l1_acc[g * 8:(g + 1) * 8, :]
    l1_ref[0, 0] = part


def _field_kernel(w_ref, b_ref, s_ref, code_ref, t_ref,
                  stack_ref, flow_ref, *, c, tr, lane):
    """Fused: field 1x1x1 conv; output=tanh(y[:C]); flow=y[C:]; NCC products."""
    ys = []
    for co in range(c + 3):
        acc = jnp.zeros((tr, lane), jnp.float32) + b_ref[0, co]
        for ci in range(c):
            acc = acc + w_ref[ci, co] * s_ref[0, ci]
            acc = acc + w_ref[c + ci, co] * code_ref[0, ci]
        ys.append(acc)
    for co in range(c):
        i_co = jnp.tanh(ys[co])
        tp_co = (t_ref[0, co] + 1.0) * 0.5          # min_max=(-1,1) normalized target
        stack_ref[0, 0 * c + co] = i_co
        stack_ref[0, 1 * c + co] = tp_co
        stack_ref[0, 2 * c + co] = i_co * i_co
        stack_ref[0, 3 * c + co] = tp_co * tp_co
        stack_ref[0, 4 * c + co] = i_co * tp_co
    for k in range(3):
        flow_ref[0, k] = ys[c + k]


def _ncc_combine_kernel(i_ref, t_ref, ii_ref, tt_ref, it_ref, o_ref,
                        *, ksize, tr, lane):
    """Local NCC combine on box-summed slabs; per-block partial sums of cc."""
    i_s = i_ref[...]
    t_s = t_ref[...]
    inv_k = 1.0 / ksize
    ihat = i_s * inv_k
    that = t_s * inv_k
    cross = it_ref[...] - ihat * t_s - that * i_s + that * ihat * ksize
    t_var = tt_ref[...] - 2.0 * that * t_s + that * that * ksize
    i_var = ii_ref[...] - 2.0 * ihat * i_s + ihat * ihat * ksize
    cc = cross * cross / (t_var * i_var + 1e-5)      # zero-padded tail -> cc == 0
    part = jnp.zeros((8, lane), jnp.float32)
    for g in range(tr // 8):
        part = part + cc[g * 8:(g + 1) * 8, :]
    o_ref[0] = part


def _grad_l2_kernel(f_ref, dd_ref, dh_ref, dw_ref, *, d, h, w):
    """Squared finite-difference partial sums for one (batch, flow-channel) volume."""
    f = f_ref[0]                                     # (D, H*W)
    if d > 1:
        dd = f[1:, :] - f[:-1, :]
        dd_s = jnp.sum(dd * dd)
    else:
        dd_s = jnp.zeros((), jnp.float32)
    if h > 1:
        dh = f[:, w:] - f[:, :-w]
        dh_s = jnp.sum(dh * dh)
    else:
        dh_s = jnp.zeros((), jnp.float32)
    if w > 1:
        dwf = f[:, 1:] - f[:, :-1]
        colw = jax.lax.broadcasted_iota(jnp.int32, dwf.shape, 1)
        mw = (((colw + 1) % w) != 0).astype(jnp.float32)
        dw_s = jnp.sum(dwf * dwf * mw)
    else:
        dw_s = jnp.zeros((), jnp.float32)
    dd_ref[0, 0] = jnp.zeros((LANE,), jnp.float32) + dd_s
    dh_ref[0, 0] = jnp.zeros((LANE,), jnp.float32) + dh_s
    dw_ref[0, 0] = jnp.zeros((LANE,), jnp.float32) + dw_s


# ----------------------------------------------------------------------------
# Kernel wrappers
# ----------------------------------------------------------------------------

def fused_qsample_denoise(s_slab, t_slab, n_slab, coefs, w_dn, b_dn, n_valid, tr):
    b, c, rows, lane = s_slab.shape
    nr = rows // tr
    blk = pl.BlockSpec((1, c, tr, lane), lambda i, r: (i, 0, r, 0))
    kern = functools.partial(_qsample_denoise_kernel,
                             c=c, n_valid=n_valid, tr=tr, lane=lane)
    xt, code, l1p = pl.pallas_call(
        kern,
        grid=(b, nr),
        in_specs=[_SMEM, _SMEM, _SMEM, blk, blk, blk],
        out_specs=[blk, blk,
                   pl.BlockSpec((1, 1, 8, lane), lambda i, r: (i, r, 0, 0))],
        out_shape=[jax.ShapeDtypeStruct((b, c, rows, lane), jnp.float32),
                   jax.ShapeDtypeStruct((b, c, rows, lane), jnp.float32),
                   jax.ShapeDtypeStruct((b, nr, 8, lane), jnp.float32)],
        compiler_params=pltpu.CompilerParams(
            dimension_semantics=("parallel", "parallel")),
    )(coefs, w_dn, b_dn, s_slab, t_slab, n_slab)
    return xt, code, jnp.sum(l1p)


def fused_field(s_slab, code_slab, t_slab, w_f, b_f, tr):
    b, c, rows, lane = s_slab.shape
    nr = rows // tr
    blk_c = pl.BlockSpec((1, c, tr, lane), lambda i, r: (i, 0, r, 0))
    blk_5c = pl.BlockSpec((1, 5 * c, tr, lane), lambda i, r: (i, 0, r, 0))
    blk_3 = pl.BlockSpec((1, 3, tr, lane), lambda i, r: (i, 0, r, 0))
    kern = functools.partial(_field_kernel, c=c, tr=tr, lane=lane)
    stack, flow = pl.pallas_call(
        kern,
        grid=(b, nr),
        in_specs=[_SMEM, _SMEM, blk_c, blk_c, blk_c],
        out_specs=[blk_5c, blk_3],
        out_shape=[jax.ShapeDtypeStruct((b, 5 * c, rows, lane), jnp.float32),
                   jax.ShapeDtypeStruct((b, 3, rows, lane), jnp.float32)],
        compiler_params=pltpu.CompilerParams(
            dimension_semantics=("parallel", "parallel")),
    )(w_f, b_f, s_slab, code_slab, t_slab)
    return stack, flow


def _box_sum9(x):
    """Separable 9x9x9 box sum (== conv3d with all-ones 9^3 filter, padding=4)."""
    for ax in (2, 3, 4):
        win = [1] * 5
        win[ax] = 9
        x = jax.lax.reduce_window(x, 0.0, jax.lax.add, tuple(win), (1,) * 5, 'SAME')
    return x


def ncc_combine(groups, numel):
    rows, tr = _plan(numel)
    nr = rows // tr
    slabs = [_flatten_rows(g, rows) for g in groups]
    blk = pl.BlockSpec((tr, LANE), lambda i: (i, 0))
    kern = functools.partial(_ncc_combine_kernel, ksize=9.0 * 9.0 * 9.0,
                             tr=tr, lane=LANE)
    parts = pl.pallas_call(
        kern,
        grid=(nr,),
        in_specs=[blk] * 5,
        out_specs=pl.BlockSpec((1, 8, LANE), lambda i: (i, 0, 0)),
        out_shape=jax.ShapeDtypeStruct((nr, 8, LANE), jnp.float32),
        compiler_params=pltpu.CompilerParams(dimension_semantics=("parallel",)),
    )(*slabs)
    return -jnp.sum(parts) / float(numel)


def grad_l2(flow, d, h, w):
    # TODO(synk): one (D, H*W) component per grid step; tile along D with a halo
    # for very large volumes to stay inside the v7x 64 MiB VMEM budget.
    bc = flow.shape[0] * 3
    f = flow.reshape(bc, d, h * w).astype(jnp.float32)
    blk = pl.BlockSpec((1, d, h * w), lambda i: (i, 0, 0))
    oblk = pl.BlockSpec((1, 1, LANE), lambda i: (i, 0, 0))
    kern = functools.partial(_grad_l2_kernel, d=d, h=h, w=w)
    dd, dh_, dw_ = pl.pallas_call(
        kern,
        grid=(bc,),
        in_specs=[blk],
        out_specs=[oblk, oblk, oblk],
        out_shape=[jax.ShapeDtypeStruct((bc, 1, LANE), jnp.float32)] * 3,
        compiler_params=pltpu.CompilerParams(dimension_semantics=("parallel",)),
    )(f)
    n_dd = max(1, bc * (d - 1) * h * w)
    n_dh = max(1, bc * d * (h - 1) * w)
    n_dw = max(1, bc * d * h * (w - 1))
    return (jnp.sum(dd[:, 0, 0]) / n_dd
            + jnp.sum(dh_[:, 0, 0]) / n_dh
            + jnp.sum(dw_[:, 0, 0]) / n_dw) / 3.0


# ----------------------------------------------------------------------------
# GaussianDiffusion (forward == p_losses)
# ----------------------------------------------------------------------------

def make_beta_schedule_linear(n_timestep, linear_start=1e-4, linear_end=2e-2):
    return np.linspace(linear_start, linear_end, n_timestep, dtype=np.float64)


class GaussianDiffusionPallas:
    def __init__(self, channels=1, loss_type='l1', n_timestep=100,
                 linear_start=1e-4, linear_end=2e-2, key=None):
        assert loss_type == 'l1'
        self.channels = channels
        self.loss_type = loss_type

        betas = make_beta_schedule_linear(n_timestep, linear_start, linear_end)
        alphas = 1.0 - betas
        alphas_cumprod = np.cumprod(alphas, axis=0)
        self.num_timesteps = int(n_timestep)
        self.sqrt_alphas_cumprod = jnp.asarray(np.sqrt(alphas_cumprod), jnp.float32)
        self.sqrt_one_minus_alphas_cumprod = jnp.asarray(
            np.sqrt(1.0 - alphas_cumprod), jnp.float32)

        # TODO(synk): denoise_fn / field_fn are constructor-injected external nets
        # (3D UNet / registration net) in DiffuseMorph. Stand-ins: fused 1x1x1 convs.
        c = channels
        k1, k2 = jax.random.split(key, 2)
        self.w_denoise = 0.1 * jax.random.normal(k1, (3 * c, c), jnp.float32)
        self.b_denoise = jnp.zeros((1, c), jnp.float32)
        self.w_field = 0.1 * jax.random.normal(k2, (2 * c, c + 3), jnp.float32)
        self.b_field = jnp.zeros((1, c + 3), jnp.float32)

    def p_losses(self, x_in, loss_lambda, key, noise=None):
        S = x_in['S']
        T = x_in['T']                     # x_start
        b, c, d, h, w = T.shape
        kt, kn = jax.random.split(key)
        t = jax.random.randint(kt, (b,), 0, self.num_timesteps)
        if noise is None:
            noise = jax.random.normal(kn, T.shape, jnp.float32)

        n_spatial = d * h * w
        rows, tr = _plan(n_spatial)
        s_slab = _to_slab(S, rows)
        t_slab = _to_slab(T, rows)
        n_slab = _to_slab(noise, rows)

        a_t = self.sqrt_alphas_cumprod[t]
        s_t = self.sqrt_one_minus_alphas_cumprod[t]
        t_bias = 0.1 * t.astype(jnp.float32) / float(self.num_timesteps)
        coefs = jnp.stack([a_t, s_t, t_bias], axis=0).astype(jnp.float32)  # (3, B)

        # Kernel 1: q_sample + denoise conv + tanh + t-bias + L1 partials (fused)
        xt_slab, code_slab, l1_sum = fused_qsample_denoise(
            s_slab, t_slab, n_slab, coefs, self.w_denoise, self.b_denoise,
            n_spatial, tr)
        numel = float(b * c * d * h * w)
        l_pix = l1_sum / numel

        # Kernel 2: field conv + tanh split + NCC elementwise products (fused)
        stack_slab, flow_slab = fused_field(
            s_slab, code_slab, t_slab, self.w_field, self.b_field, tr)

        x_t = _from_slab(xt_slab, (d, h, w), n_spatial)
        code = _from_slab(code_slab, (d, h, w), n_spatial)
        stack = _from_slab(stack_slab, (d, h, w), n_spatial)   # [B, 5C, D, H, W]
        flow = _from_slab(flow_slab, (d, h, w), n_spatial)     # [B, 3, D, H, W]

        # Separable 9x9x9 box sums over the 5 stacked channels in one pass, then
        # Kernel 3: NCC combine partial sums.
        boxed = _box_sum9(stack)
        groups = [boxed[:, g * c:(g + 1) * c] for g in range(5)]
        l_sim = ncc_combine(groups, b * c * d * h * w) * loss_lambda

        # Kernel 4: grad-l2 smoothness partial sums.
        l_smt = grad_l2(flow, d, h, w) * loss_lambda

        loss = l_pix + l_sim + l_smt
        return [code, x_t], [l_pix, l_sim, l_smt, loss]

    def forward(self, x, loss_lambda, key):
        return self.p_losses(x, loss_lambda, key)


# ----------------------------------------------------------------------------
# Main
# ----------------------------------------------------------------------------

if __name__ == "__main__":
    key = jax.random.PRNGKey(0)
    k_s, k_t, k_w, k_fwd = jax.random.split(key, 4)

    B, C, D, H, W = 2, 1, 8, 16, 16   # small 3D volumes, NCDHW
    S = jax.random.normal(k_s, (B, C, D, H, W), jnp.float32)
    T = jax.random.normal(k_t, (B, C, D, H, W), jnp.float32)

    model = GaussianDiffusionPallas(channels=C, loss_type='l1',
                                    n_timestep=100, key=k_w)
    (code, x_t), (l_pix, l_sim, l_smt, loss) = model.forward(
        {'S': S, 'T': T}, loss_lambda=10.0, key=k_fwd)

    jax.block_until_ready((code, x_t, l_pix, l_sim, l_smt, loss))
    assert code.shape == (B, C, D, H, W) and x_t.shape == (B, C, D, H, W)
    assert bool(np.isfinite(np.asarray(loss)))
    print("KERNEL_OK")
</pallas_src>

<mosaic_0001>
module attributes {stable_mosaic.version = 11 : i64} {
  func.func @_qsample_denoise_kernel(%arg0: i32, %arg1: i32, %arg2: memref<3x2xf32, #tpu.memory_space<smem>>, %arg3: memref<3x1xf32, #tpu.memory_space<smem>>, %arg4: memref<1x1xf32, #tpu.memory_space<smem>>, %arg5: memref<1x1x16x128xf32, #tpu.memory_space<vmem>>, %arg6: memref<1x1x16x128xf32, #tpu.memory_space<vmem>>, %arg7: memref<1x1x16x128xf32, #tpu.memory_space<vmem>>, %arg8: memref<1x1x16x128xf32, #tpu.memory_space<vmem>>, %arg9: memref<1x1x16x128xf32, #tpu.memory_space<vmem>>, %arg10: memref<1x1x8x128xf32, #tpu.memory_space<vmem>>) attributes {dimension_semantics = [#tpu.dimension_semantics<parallel>, #tpu.dimension_semantics<parallel>], iteration_bounds = array<i64: 2, 1>, scalar_prefetch = 0 : i64, scratch_operands = 0 : i64, tpu.core_type = #tpu.core_type<tc>, window_params = [{transform_indices = @transform_0, window_bounds = array<i64: 3, 2>}, {transform_indices = @transform_1, window_bounds = array<i64: 3, 1>}, {transform_indices = @transform_2, window_bounds = array<i64: 1, 1>}, {transform_indices = @transform_3, window_bounds = array<i64: 1, 1, 16, 128>}, {transform_indices = @transform_4, window_bounds = array<i64: 1, 1, 16, 128>}, {transform_indices = @transform_5, window_bounds = array<i64: 1, 1, 16, 128>}, {transform_indices = @transform_6, window_bounds = array<i64: 1, 1, 16, 128>}, {transform_indices = @transform_7, window_bounds = array<i64: 1, 1, 16, 128>}, {transform_indices = @transform_8, window_bounds = array<i64: 1, 1, 8, 128>}]} {
    %c0 = arith.constant 0 : index
    %0 = arith.index_cast %arg0 : i32 to index
    %1 = memref.load %arg2[%c0, %0] : memref<3x2xf32, #tpu.memory_space<smem>>
    %c1 = arith.constant 1 : index
    %2 = arith.index_cast %arg0 : i32 to index
    %3 = memref.load %arg2[%c1, %2] : memref<3x2xf32, #tpu.memory_space<smem>>
    %c2 = arith.constant 2 : index
    %4 = arith.index_cast %arg0 : i32 to index
    %5 = memref.load %arg2[%c2, %4] : memref<3x2xf32, #tpu.memory_space<smem>>
    %6 = tpu.iota {dimensions = array<i32: 0>} : vector<16x128xi32>
    %c16_i32 = arith.constant 16 : i32
    %7 = arith.muli %arg1, %c16_i32 : i32
    %8 = vector.broadcast %7 : i32 to vector<16x128xi32>
    %9 = arith.addi %6, %8 : vector<16x128xi32>
    %10 = tpu.iota {dimensions = array<i32: 1>} : vector<16x128xi32>
    %c128_i32 = arith.constant 128 : i32
    %11 = vector.broadcast %c128_i32 : i32 to vector<16x128xi32>
    %12 = arith.muli %9, %11 : vector<16x128xi32>
    %13 = arith.addi %12, %10 : vector<16x128xi32>
    %c2048_i32 = arith.constant 2048 : i32
    %14 = vector.broadcast %c2048_i32 : i32 to vector<16x128xi32>
    %15 = arith.cmpi slt, %13, %14 : vector<16x128xi32>
    %16 = arith.extui %15 : vector<16x128xi1> to vector<16x128xi32>
    %17 = arith.sitofp %16 : vector<16x128xi32> to vector<16x128xf32>
    %c0_0 = arith.constant 0 : index
    %c0_1 = arith.constant 0 : index
    %c0_2 = arith.constant 0 : index
    %c0_3 = arith.constant 0 : index
    %18 = vector.load %arg6[%c0_0, %c0_1, %c0_2, %c0_3] : memref<1x1x16x128xf32, #tpu.memory_space<vmem>>, vector<1x1x16x128xf32>
    %19 = vector.shape_cast %18 : vector<1x1x16x128xf32> to vector<16x128xf32>
    %20 = vector.broadcast %1 : f32 to vector<16x128xf32>
    %21 = arith.mulf %20, %19 : vector<16x128xf32>
    %c0_4 = arith.constant 0 : index
    %c0_5 = arith.constant 0 : index
    %c0_6 = arith.constant 0 : index
    %c0_7 = arith.constant 0 : index
    %22 = vector.load %arg7[%c0_4, %c0_5, %c0_6, %c0_7] : memref<1x1x16x128xf32, #tpu.memory_space<vmem>>, vector<1x1x16x128xf32>
    %23 = vector.shape_cast %22 : vector<1x1x16x128xf32> to vector<16x128xf32>
    %24 = vector.broadcast %3 : f32 to vector<16x128xf32>
    %25 = arith.mulf %24, %23 : vector<16x128xf32>
    %26 = arith.addf %21, %25 : vector<16x128xf32>
    %c0_8 = arith.constant 0 : index
    %c0_9 = arith.constant 0 : index
    %c0_10 = arith.constant 0 : index
    %c0_11 = arith.constant 0 : index
    %27 = vector.load %arg8[%c0_8, %c0_9, %c0_10, %c0_11] : memref<1x1x16x128xf32, #tpu.memory_space<vmem>>, vector<1x1x16x128xf32>
    %28 = vector.shape_cast %27 : vector<1x1x16x128xf32> to vector<16x128xf32>
    %29 = vector.shape_cast %26 : vector<16x128xf32> to vector<1x1x16x128xf32>
    tpu.vector_store %arg8[%c0_8, %c0_9, %c0_10, %c0_11], %29 {strides = array<i32>} : memref<1x1x16x128xf32, #tpu.memory_space<vmem>>, vector<1x1x16x128xf32>,
    %cst = arith.constant 0.000000e+00 : f32
    %30 = vector.broadcast %cst : f32 to vector<16x128xf32>
    %cst_12 = arith.constant 0.000000e+00 : f32
    %31 = vector.broadcast %cst_12 : f32 to vector<16x128xf32>
    %c0_13 = arith.constant 0 : index
    %c0_14 = arith.constant 0 : index
    %32 = memref.load %arg4[%c0_13, %c0_14] : memref<1x1xf32, #tpu.memory_space<smem>>
    %33 = vector.broadcast %32 : f32 to vector<16x128xf32>
    %34 = arith.addf %31, %33 : vector<16x128xf32>
    %c0_15 = arith.constant 0 : index
    %c0_16 = arith.constant 0 : index
    %35 = memref.load %arg3[%c0_15, %c0_16] : memref<3x1xf32, #tpu.memory_space<smem>>
    %c0_17 = arith.constant 0 : index
    %c0_18 = arith.constant 0 : index
    %c0_19 = arith.constant 0 : index
    %c0_20 = arith.constant 0 : index
    %36 = vector.load %arg5[%c0_17, %c0_18, %c0_19, %c0_20] : memref<1x1x16x128xf32, #tpu.memory_space<vmem>>, vector<1x1x16x128xf32>
    %37 = vector.shape_cast %36 : vector<1x1x16x128xf32> to vector<16x128xf32>
    %38 = vector.broadcast %35 : f32 to vector<16x128xf32>
    %39 = arith.mulf %38, %37 : vector<16x128xf32>
    %40 = arith.addf %34, %39 : vector<16x128xf32>
    %c1_21 = arith.constant 1 : index
    %c0_22 = arith.constant 0 : index
    %41 = memref.load %arg3[%c1_21, %c0_22] : memref<3x1xf32, #tpu.memory_space<smem>>
    %c0_23 = arith.constant 0 : index
    %c0_24 = arith.constant 0 : index
    %c0_25 = arith.constant 0 : index
    %c0_26 = arith.constant 0 : index
    %42 = vector.load %arg6[%c0_23, %c0_24, %c0_25, %c0_26] : memref<1x1x16x128xf32, #tpu.memory_space<vmem>>, vector<1x1x16x128xf32>
    %43 = vector.shape_cast %42 : vector<1x1x16x128xf32> to vector<16x128xf32>
    %44 = vector.broadcast %41 : f32 to vector<16x128xf32>
    %45 = arith.mulf %44, %43 : vector<16x128xf32>
    %46 = arith.addf %40, %45 : vector<16x128xf32>
    %c2_27 = arith.constant 2 : index
    %c0_28 = arith.constant 0 : index
    %47 = memref.load %arg3[%c2_27, %c0_28] : memref<3x1xf32, #tpu.memory_space<smem>>
    %48 = vector.broadcast %47 : f32 to vector<16x128xf32>
    %49 = arith.mulf %48, %26 : vector<16x128xf32>
    %50 = arith.addf %46, %49 : vector<16x128xf32>
    %51 = math.tanh %50 : vector<16x128xf32>
    %52 = vector.broadcast %5 : f32 to vector<16x128xf32>
    %53 = arith.addf %51, %52 : vector<16x128xf32>
    %c0_29 = arith.constant 0 : index
    %c0_30 = arith.constant 0 : index
    %c0_31 = arith.constant 0 : index
    %c0_32 = arith.constant 0 : index
    %54 = vector.load %arg9[%c0_29, %c0_30, %c0_31, %c0_32] : memref<1x1x16x128xf32, #tpu.memory_space<vmem>>, vector<1x1x16x128xf32>
    %55 = vector.shape_cast %54 : vector<1x1x16x128xf32> to vector<16x128xf32>
    %56 = vector.shape_cast %53 : vector<16x128xf32> to vector<1x1x16x128xf32>
    tpu.vector_store %arg9[%c0_29, %c0_30, %c0_31, %c0_32], %56 {strides = array<i32>} : memref<1x1x16x128xf32, #tpu.memory_space<vmem>>, vector<1x1x16x128xf32>,
    %c0_33 = arith.constant 0 : index
    %c0_34 = arith.constant 0 : index
    %c0_35 = arith.constant 0 : index
    %c0_36 = arith.constant 0 : index
    %57 = vector.load %arg7[%c0_33, %c0_34, %c0_35, %c0_36] : memref<1x1x16x128xf32, #tpu.memory_space<vmem>>, vector<1x1x16x128xf32>
    %58 = vector.shape_cast %57 : vector<1x1x16x128xf32> to vector<16x128xf32>
    %59 = arith.subf %58, %53 : vector<16x128xf32>
    %60 = math.absf %59 : vector<16x128xf32>
    %61 = arith.mulf %60, %17 : vector<16x128xf32>
    %62 = arith.addf %30, %61 : vector<16x128xf32>
    %cst_37 = arith.constant 0.000000e+00 : f32
    %63 = vector.broadcast %cst_37 : f32 to vector<8x128xf32>
    %64 = vector.extract_strided_slice %62 {offsets = [0, 0], sizes = [8, 128], strides = [1, 1]} : vector<16x128xf32> to vector<8x128xf32>
    %65 = arith.addf %63, %64 : vector<8x128xf32>
    %66 = vector.extract_strided_slice %62 {offsets = [8, 0], sizes = [8, 128], strides = [1, 1]} : vector<16x128xf32> to vector<8x128xf32>
    %67 = arith.addf %65, %66 : vector<8x128xf32>
    %c0_38 = arith.constant 0 : index
    %c0_39 = arith.constant 0 : index
    %c0_40 = arith.constant 0 : index
    %c0_41 = arith.constant 0 : index
    %68 = vector.load %arg10[%c0_38, %c0_39, %c0_40, %c0_41] : memref<1x1x8x128xf32, #tpu.memory_space<vmem>>, vector<1x1x8x128xf32>
    %69 = vector.shape_cast %68 : vector<1x1x8x128xf32> to vector<8x128xf32>
    %70 = vector.shape_cast %67 : vector<8x128xf32> to vector<1x1x8x128xf32>
    tpu.vector_store %arg10[%c0_38, %c0_39, %c0_40, %c0_41], %70 {strides = array<i32>} : memref<1x1x8x128xf32, #tpu.memory_space<vmem>>, vector<1x1x8x128xf32>,
    return
  }
  func.func @transform_0(%arg0: i32, %arg1: i32) -> (i32, i32) {
    %c0_i32 = arith.constant 0 : i32
    %c0_i32_0 = arith.constant 0 : i32
    %c0_i32_1 = arith.constant 0 : i32
    return %c0_i32, %c0_i32_0 : i32, i32
  }
  func.func @transform_1(%arg0: i32, %arg1: i32) -> (i32, i32) {
    %c0_i32 = arith.constant 0 : i32
    %c0_i32_0 = arith.constant 0 : i32
    %c0_i32_1 = arith.constant 0 : i32
    return %c0_i32, %c0_i32_0 : i32, i32
  }
  func.func @transform_2(%arg0: i32, %arg1: i32) -> (i32, i32) {
    %c0_i32 = arith.constant 0 : i32
    %c0_i32_0 = arith.constant 0 : i32
    %c0_i32_1 = arith.constant 0 : i32
    return %c0_i32, %c0_i32_0 : i32, i32
  }
  func.func @transform_3(%arg0: i32, %arg1: i32) -> (i32, i32, i32, i32) {
    %c0_i32 = arith.constant 0 : i32
    %c0_i32_0 = arith.constant 0 : i32
    %c0_i32_1 = arith.constant 0 : i32
    return %arg0, %c0_i32, %arg1, %c0_i32_0 : i32, i32, i32, i32
  }
  func.func @transform_4(%arg0: i32, %arg1: i32) -> (i32, i32, i32, i32) {
    %c0_i32 = arith.constant 0 : i32
    %c0_i32_0 = arith.constant 0 : i32
    %c0_i32_1 = arith.constant 0 : i32
    return %arg0, %c0_i32, %arg1, %c0_i32_0 : i32, i32, i32, i32
  }
  func.func @transform_5(%arg0: i32, %arg1: i32) -> (i32, i32, i32, i32) {
    %c0_i32 = arith.constant 0 : i32
    %c0_i32_0 = arith.constant 0 : i32
    %c0_i32_1 = arith.constant 0 : i32
    return %arg0, %c0_i32, %arg1, %c0_i32_0 : i32, i32, i32, i32
  }
  func.func @transform_6(%arg0: i32, %arg1: i32) -> (i32, i32, i32, i32) {
    %c0_i32 = arith.constant 0 : i32
    %c0_i32_0 = arith.constant 0 : i32
    %c0_i32_1 = arith.constant 0 : i32
    return %arg0, %c0_i32, %arg1, %c0_i32_0 : i32, i32, i32, i32
  }
  func.func @transform_7(%arg0: i32, %arg1: i32) -> (i32, i32, i32, i32) {
    %c0_i32 = arith.constant 0 : i32
    %c0_i32_0 = arith.constant 0 : i32
    %c0_i32_1 = arith.constant 0 : i32
    return %arg0, %c0_i32, %arg1, %c0_i32_0 : i32, i32, i32, i32
  }
  func.func @transform_8(%arg0: i32, %arg1: i32) -> (i32, i32, i32, i32) {
    %c0_i32 = arith.constant 0 : i32
    %c0_i32_0 = arith.constant 0 : i32
    %c0_i32_1 = arith.constant 0 : i32
    return %arg0, %arg1, %c0_i32, %c0_i32_0 : i32, i32, i32, i32
  }
}

</mosaic_0001>

<llo_original>
// kernel: tpu_custom_call.1
$region0: #{tpu_custom_call.1}
  #allocation0 [shape = 'u32[]', space=smem, size = 0x4, offset = 0x4, fixed_abs, tag = 'smem constant byte address 0x4 - core index']
  #allocation1 [shape = 'u32[144,128]{1,0:T(1,128)}', space=vmem, size = 0x12000, scoped, tag = 'internal scratch']
  #allocation2 [shape = 'f32[1,1]{1,0:T(1,128)S(6)}', space=smem, size = 0x200, scoped, tag = 'scoped memory for tpu_custom_call.1']
  %s0 = inlined_call_operand.vmem [shape: f32[3,2], index: 0, kind: input, shape index: {}]
  %s1 = inlined_call_operand.vmem [shape: f32[3,1], index: 1, kind: input, shape index: {}]
  %s2 = inlined_call_operand.<no memory space> [shape: f32[1,1], index: 2, kind: input, shape index: {}]
  %s3 = inlined_call_operand.hbm [shape: f32[2,1,16,128], index: 3, kind: input, shape index: {}]
  %s4 = inlined_call_operand.hbm [shape: f32[2,1,16,128], index: 4, kind: input, shape index: {}]
  %s5 = inlined_call_operand.hbm [shape: f32[2,1,16,128], index: 5, kind: input, shape index: {}]
  %s6 = inlined_call_operand.hbm [shape: f32[2,1,16,128], index: 6, kind: output, shape index: {0}]
  %s7 = inlined_call_operand.hbm [shape: f32[2,1,16,128], index: 7, kind: output, shape index: {1}]
  %s8 = inlined_call_operand.hbm [shape: f32[2,1,8,128], index: 8, kind: output, shape index: {2}]
  %9 = xla_tuple %s6, %s7, %s8
  %s10 = sld [smem:[#allocation0]]
  $region93: #{tpu_custom_call.1} parent=0
    _
  %s12 = ssub.s32 1, %s10
  %s13 = scalar_select 0, %s12, %s10
  %14 = sst [smem:[#allocation2]] %s2
  $region1: #{tpu_custom_call.1} parent=0
    #allocation3 [shape = 'u8[2048]{0}', space=smem, size = 0x800, scoped, tag = 'input window, operand 0, single buffered']
    #allocation4 [shape = 's32[2]{0}', space=sflag, size = 0x8, scoped, tag = 'scoped memory for tpu_custom_call.1']
    #allocation5 [shape = 's32[2]{0}', space=sflag, size = 0x8, scoped, tag = 'scoped memory for tpu_custom_call.1']
    #allocation6 [shape = 's32[2]{0}', space=sflag, size = 0x8, scoped, tag = 'scoped memory for tpu_custom_call.1']
    #allocation7 [shape = 'u8[2048]{0}', space=smem, size = 0x800, scoped, tag = 'input window, operand 1, single buffered']
    #allocation8 [shape = 's32[1]{0}', space=sflag, size = 0x4, scoped, tag = 'scoped memory for tpu_custom_call.1']
    #allocation9 [shape = 'u8[16384]{0}', space=vmem, size = 0x4000, scoped, tag = 'input window, operand 3']
    #allocation10 [shape = 'u8[16384]{0}', space=vmem, size = 0x4000, scoped, tag = 'input window, operand 4']
    #allocation11 [shape = 's32[2]{0}', space=sflag, size = 0x8, scoped, tag = 'scoped memory for tpu_custom_call.1']
    #allocation12 [shape = 'u8[16384]{0}', space=vmem, size = 0x4000, scoped, tag = 'input window, operand 5']
    #allocation13 [shape = 'u8[16384]{0}', space=vmem, size = 0x4000, scoped, tag = 'output window, operand 0']
    #allocation14 [shape = 'u8[16384]{0}', space=vmem, size = 0x4000, scoped, tag = 'output window, operand 1']
    #allocation15 [shape = 's32[2]{0}', space=sflag, size = 0x8, scoped, tag = 'scoped memory for tpu_custom_call.1']
    #allocation16 [shape = 'u8[8192]{0}', space=vmem, size = 0x2000, scoped, tag = 'output window, operand 2']
    %15 = vsyncpa [#allocation6], 0
    %16 = vsyncpa [#allocation8], 0
    %17 = vsyncpa [#allocation4], 0
    %s18 = scalar_lea.sflag [#allocation4], 1
    %19 = vsyncpa %s18, 0
    %20 = vsyncpa [#allocation11], 0
    %s21 = scalar_lea.sflag [#allocation11], 1
    %22 = vsyncpa %s21, 0
    %23 = vsyncpa [#allocation5], 0
    %s24 = scalar_lea.sflag [#allocation5], 1
    %25 = vsyncpa %s24, 0
    %26 = vsyncpa [#allocation15], 0
    %s27 = scalar_lea.sflag [#allocation15], 1
    %28 = vsyncpa %s27, 0
    loop: start=0, step=1, limit=4
    $region2: #{tpu_custom_call.1} parent=1 // loop_pre_header
      _
    $region3: #{tpu_custom_call.1} parent=1 // loop_header
      %s30 = sphi 0, %s34
      %p31 = scmp.ge.s32.totalorder %s30, 4
      %s37 = sphi 0, %s49
      %s38 = sphi 0, %s45
      %s39 = sphi 0, %s37
      %s40 = sphi 0, %s38
      %s41 = sphi 0, %s39
      %s42 = sphi 0, %s40
      %s50 = sphi 0, %s50
      %s52 = sphi 0, %s50
      %s53 = sphi 0, %s52
      %s67 = sphi 0, %s53
      %s71 = sphi 0, %s71
      %s73 = sphi 0, %s71
      %s74 = sphi 0, %s73
      %s88 = sphi 0, %s74
      %s92 = sphi 0, %s92
      %s94 = sphi 0, %s92
      %s95 = sphi 0, %s94
      %s109 = sphi 0, %s95
      %s117 = sphi 0, %s119
      %s120 = sphi 0, %s117
      %s121 = sphi 0, %s120
      %s137 = sphi 0, %s121
      %s145 = sphi 0, %s147
      %s148 = sphi 0, %s145
      %s149 = sphi 0, %s148
      %s165 = sphi 0, %s149
      %s173 = sphi 0, %s175
      %s176 = sphi 0, %s173
      %s177 = sphi 0, %s176
      %s193 = sphi 0, %s177
      %s201 = sphi 0, %s203
      %s204 = sphi 0, %s201
      %s205 = sphi 0, %s204
      %s221 = sphi 0, %s205
      %s229 = sphi 0, %s231
      %s232 = sphi 0, %s229
      %s233 = sphi 0, %s232
      %s249 = sphi 0, %s233
      %s257 = sphi 0, %s259
      %s260 = sphi 0, %s257
      %s261 = sphi 0, %s260
      %s277 = sphi 0, %s261
    $region4: #{tpu_custom_call.1} parent=1 // loop_header_branch
      %33 = sbr.rel (%p31) target = $region8
    $region5: #{tpu_custom_call.1} parent=1 // loop_body
      %s35 = ssub.s32 %s30, 1
      %s36 = ssub.s32 %s30, 2
      %s43 = sadd.s32 1, %s38
      %p44 = scmp.ge.s32.totalorder %s43, 1
      %s45 = scalar_select %p44, 0, %s43
      %s46 = sadd.s32 1, %s37
      %s47 = scalar_select %p44, %s46, %s37
      %p48 = scmp.ge.s32.totalorder %s47, 2
      %s49 = scalar_select %p48, 0, %s47
      %s51 = sadd.s32 %s50, 1
      %p54 = scmp.eq.s32.totalorder %s30, 1
      %p55 = scmp.ne.s32.totalorder %s50, %s52
      %p56 = scmp.eq.s32.totalorder %s30, 0
      %p57 = por %p55, %p56
      %p58 = scmp.ne.s32.totalorder %s50, %s52
      %p59 = scmp.eq.s32.totalorder %s35, 1
      %p60 = por %p58, %p59
      %p61 = scmp.ne.s32.totalorder %s52, %s53
      %p62 = scmp.eq.s32.totalorder %s35, 0
      %p63 = por %p61, %p62
      %p64 = scmp.ne.s32.totalorder %s52, %s53
      %p65 = scmp.eq.s32.totalorder %s36, 1
      %p66 = por %p64, %p65
      %p68 = scmp.ne.s32.totalorder %s53, %s67
      %p69 = scmp.eq.s32.totalorder %s36, 0
      %p70 = por %p68, %p69
      %s72 = sadd.s32 %s71, 1
      %p75 = scmp.eq.s32.totalorder %s30, 1
      %p76 = scmp.ne.s32.totalorder %s71, %s73
      %p77 = scmp.eq.s32.totalorder %s30, 0
      %p78 = por %p76, %p77
      %p79 = scmp.ne.s32.totalorder %s71, %s73
      %p80 = scmp.eq.s32.totalorder %s35, 1
      %p81 = por %p79, %p80
      %p82 = scmp.ne.s32.totalorder %s73, %s74
      %p83 = scmp.eq.s32.totalorder %s35, 0
      %p84 = por %p82, %p83
      %p85 = scmp.ne.s32.totalorder %s73, %s74
      %p86 = scmp.eq.s32.totalorder %s36, 1
      %p87 = por %p85, %p86
      %p89 = scmp.ne.s32.totalorder %s74, %s88
      %p90 = scmp.eq.s32.totalorder %s36, 0
      %p91 = por %p89, %p90
      %s93 = sadd.s32 %s92, 1
      %p96 = scmp.eq.s32.totalorder %s30, 1
      %p97 = scmp.ne.s32.totalorder %s92, %s94
      %p98 = scmp.eq.s32.totalorder %s30, 0
      %p99 = por %p97, %p98
      %p100 = scmp.ne.s32.totalorder %s92, %s94
      %p101 = scmp.eq.s32.totalorder %s35, 1
      %p102 = por %p100, %p101
      %p103 = scmp.ne.s32.totalorder %s94, %s95
      %p104 = scmp.eq.s32.totalorder %s35, 0
      %p105 = por %p103, %p104
      %p106 = scmp.ne.s32.totalorder %s94, %s95
      %p107 = scmp.eq.s32.totalorder %s36, 1
      %p108 = por %p106, %p107
      %p110 = scmp.ne.s32.totalorder %s95, %s109
      %p111 = scmp.eq.s32.totalorder %s36, 0
      %p112 = por %p110, %p111
      %s113 = ssub.s32 %s37, %s49
      %s114 = ssub.s32 %s38, %s45
      %s115 = sor.u32 %s113, %s114
      %p116 = scmp.eq.s32.totalorder %s115, 0
      %s118 = sadd.s32 %s117, 1
      %s119 = scalar_select %p116, %s117, %s118
      %p122 = pneg %p116
      %p123 = scmp.eq.s32.totalorder %s30, 1
      %p124 = por %p122, %p123
      %p125 = scmp.ne.s32.totalorder %s117, %s120
      %p126 = scmp.eq.s32.totalorder %s30, 0
      %p127 = por %p125, %p126
      %p128 = scmp.ne.s32.totalorder %s117, %s120
      %p129 = scmp.eq.s32.totalorder %s35, 1
      %p130 = por %p128, %p129
      %p131 = scmp.ne.s32.totalorder %s120, %s121
      %p132 = scmp.eq.s32.totalorder %s35, 0
      %p133 = por %p131, %p132
      %p134 = scmp.ne.s32.totalorder %s120, %s121
      %p135 = scmp.eq.s32.totalorder %s36, 1
      %p136 = por %p134, %p135
      %p138 = scmp.ne.s32.totalorder %s121, %s137
      %p139 = scmp.eq.s32.totalorder %s36, 0
      %p140 = por %p138, %p139
      %s141 = ssub.s32 %s37, %s49
      %s142 = ssub.s32 %s38, %s45
      %s143 = sor.u32 %s141, %s142
      %p144 = scmp.eq.s32.totalorder %s143, 0
      %s146 = sadd.s32 %s145, 1
      %s147 = scalar_select %p144, %s145, %s146
      %p150 = pneg %p144
      %p151 = scmp.eq.s32.totalorder %s30, 1
      %p152 = por %p150, %p151
      %p153 = scmp.ne.s32.totalorder %s145, %s148
      %p154 = scmp.eq.s32.totalorder %s30, 0
      %p155 = por %p153, %p154
      %p156 = scmp.ne.s32.totalorder %s145, %s148
      %p157 = scmp.eq.s32.totalorder %s35, 1
      %p158 = por %p156, %p157
      %p159 = scmp.ne.s32.totalorder %s148, %s149
      %p160 = scmp.eq.s32.totalorder %s35, 0
      %p161 = por %p159, %p160
      %p162 = scmp.ne.s32.totalorder %s148, %s149
      %p163 = scmp.eq.s32.totalorder %s36, 1
      %p164 = por %p162, %p163
      %p166 = scmp.ne.s32.totalorder %s149, %s165
      %p167 = scmp.eq.s32.totalorder %s36, 0
      %p168 = por %p166, %p167
      %s169 = ssub.s32 %s37, %s49
      %s170 = ssub.s32 %s38, %s45
      %s171 = sor.u32 %s169, %s170
      %p172 = scmp.eq.s32.totalorder %s171, 0
      %s174 = sadd.s32 %s173, 1
      %s175 = scalar_select %p172, %s173, %s174
      %p178 = pneg %p172
      %p179 = scmp.eq.s32.totalorder %s30, 1
      %p180 = por %p178, %p179
      %p181 = scmp.ne.s32.totalorder %s173, %s176
      %p182 = scmp.eq.s32.totalorder %s30, 0
      %p183 = por %p181, %p182
      %p184 = scmp.ne.s32.totalorder %s173, %s176
      %p185 = scmp.eq.s32.totalorder %s35, 1
      %p186 = por %p184, %p185
      %p187 = scmp.ne.s32.totalorder %s176, %s177
      %p188 = scmp.eq.s32.totalorder %s35, 0
      %p189 = por %p187, %p188
      %p190 = scmp.ne.s32.totalorder %s176, %s177
      %p191 = scmp.eq.s32.totalorder %s36, 1
      %p192 = por %p190, %p191
      %p194 = scmp.ne.s32.totalorder %s177, %s193
      %p195 = scmp.eq.s32.totalorder %s36, 0
      %p196 = por %p194, %p195
      %s197 = ssub.s32 %s37, %s49
      %s198 = ssub.s32 %s38, %s45
      %s199 = sor.u32 %s197, %s198
      %p200 = scmp.eq.s32.totalorder %s199, 0
      %s202 = sadd.s32 %s201, 1
      %s203 = scalar_select %p200, %s201, %s202
      %p206 = pneg %p200
      %p207 = scmp.eq.s32.totalorder %s30, 1
      %p208 = por %p206, %p207
      %p209 = scmp.ne.s32.totalorder %s201, %s204
      %p210 = scmp.eq.s32.totalorder %s30, 0
      %p211 = por %p209, %p210
      %p212 = scmp.ne.s32.totalorder %s201, %s204
      %p213 = scmp.eq.s32.totalorder %s35, 1
      %p214 = por %p212, %p213
      %p215 = scmp.ne.s32.totalorder %s204, %s205
      %p216 = scmp.eq.s32.totalorder %s35, 0
      %p217 = por %p215, %p216
      %p218 = scmp.ne.s32.totalorder %s204, %s205
      %p219 = scmp.eq.s32.totalorder %s36, 1
      %p220 = por %p218, %p219
      %p222 = scmp.ne.s32.totalorder %s205, %s221
      %p223 = scmp.eq.s32.totalorder %s36, 0
      %p224 = por %p222, %p223
      %s225 = ssub.s32 %s37, %s49
      %s226 = ssub.s32 %s38, %s45
      %s227 = sor.u32 %s225, %s226
      %p228 = scmp.eq.s32.totalorder %s227, 0
      %s230 = sadd.s32 %s229, 1
      %s231 = scalar_select %p228, %s229, %s230
      %p234 = pneg %p228
      %p235 = scmp.eq.s32.totalorder %s30, 1
      %p236 = por %p234, %p235
      %p237 = scmp.ne.s32.totalorder %s229, %s232
      %p238 = scmp.eq.s32.totalorder %s30, 0
      %p239 = por %p237, %p238
      %p240 = scmp.ne.s32.totalorder %s229, %s232
      %p241 = scmp.eq.s32.totalorder %s35, 1
      %p242 = por %p240, %p241
      %p243 = scmp.ne.s32.totalorder %s232, %s233
      %p244 = scmp.eq.s32.totalorder %s35, 0
      %p245 = por %p243, %p244
      %p246 = scmp.ne.s32.totalorder %s232, %s233
      %p247 = scmp.eq.s32.totalorder %s36, 1
      %p248 = por %p246, %p247
      %p250 = scmp.ne.s32.totalorder %s233, %s249
      %p251 = scmp.eq.s32.totalorder %s36, 0
      %p252 = por %p250, %p251
      %s253 = ssub.s32 %s37, %s49
      %s254 = ssub.s32 %s38, %s45
      %s255 = sor.u32 %s253, %s254
      %p256 = scmp.eq.s32.totalorder %s255, 0
      %s258 = sadd.s32 %s257, 1
      %s259 = scalar_select %p256, %s257, %s258
      %p262 = pneg %p256
      %p263 = scmp.eq.s32.totalorder %s30, 1
      %p264 = por %p262, %p263
      %p265 = scmp.ne.s32.totalorder %s257, %s260
      %p266 = scmp.eq.s32.totalorder %s30, 0
      %p267 = por %p265, %p266
      %p268 = scmp.ne.s32.totalorder %s257, %s260
      %p269 = scmp.eq.s32.totalorder %s35, 1
      %p270 = por %p268, %p269
      %p271 = scmp.ne.s32.totalorder %s260, %s261
      %p272 = scmp.eq.s32.totalorder %s35, 0
      %p273 = por %p271, %p272
      %p274 = scmp.ne.s32.totalorder %s260, %s261
      %p275 = scmp.eq.s32.totalorder %s36, 1
      %p276 = por %p274, %p275
      %p278 = scmp.ne.s32.totalorder %s261, %s277
      %p279 = scmp.eq.s32.totalorder %s36, 0
      %p280 = por %p278, %p279
      %p281 = scmp.le.s32.totalorder 1, %s30
      %p282 = scmp.lt.s32.totalorder %s30, 3
      %p283 = pnand %p281, %p282
      %p284 = pneg %p283
      // Predicated region
      $region9: #{tpu_custom_call.1} parent=5 // pred_check
        _
      $region10: #{tpu_custom_call.1} parent=5 // pred_check_branch
        %286 = sbr.rel (%p283) target = $region12
      $region11: #{tpu_custom_call.1} parent=5 // pred_region
        %s287 = ssub.s32 %s30, 1
        // Predicated region
        $region13: #{tpu_custom_call.1} parent=11 // pred_check
          %p288 = pneg %p63
        $region14: #{tpu_custom_call.1} parent=11 // pred_check_branch
          %290 = sbr.rel (%p288) target = $region16
        $region15: #{tpu_custom_call.1} parent=11 // pred_region
          %s292 = ssub.s32 64, 64
          %293 = vsyncadd [#allocation6], %s292
          %s295 = sshll.u32 %s0, 4
          %s296 = int_to_ptr.vmem [resolvable:$true] %s295
          %298 = dma.vmem_to_smem %s296, 64, [#allocation3], [#allocation6]
        $region16: #{tpu_custom_call.1} parent=11 // pred_fallthru
          _
        // Predicated region
        $region17: #{tpu_custom_call.1} parent=11 // pred_check
          %p299 = pneg %p84
        $region18: #{tpu_custom_call.1} parent=11 // pred_check_branch
          %301 = sbr.rel (%p299) target = $region20
        $region19: #{tpu_custom_call.1} parent=11 // pred_region
          %s303 = ssub.s32 64, 64
          %304 = vsyncadd [#allocation8], %s303
          %s306 = sshll.u32 %s1, 4
          %s307 = int_to_ptr.vmem [resolvable:$true] %s306
          %309 = dma.vmem_to_smem %s307, 64, [#allocation7], [#allocation8]
        $region20: #{tpu_custom_call.1} parent=11 // pred_fallthru
          _
        // Predicated region
        $region21: #{tpu_custom_call.1} parent=11 // pred_check
          %p310 = pneg %p105
        $region22: #{tpu_custom_call.1} parent=11 // pred_check_branch
          %312 = sbr.rel (%p310) target = $region24
        $region23: #{tpu_custom_call.1} parent=11 // pred_region
          _
        $region24: #{tpu_custom_call.1} parent=11 // pred_fallthru
          _
      $region12: #{tpu_custom_call.1} parent=5 // pred_fallthru
        _
      %p313 = scmp.lt.s32.totalorder %s30, 2
      // Predicated region
      $region25: #{tpu_custom_call.1} parent=5 // pred_check
        %p314 = pneg %p313
      $region26: #{tpu_custom_call.1} parent=5 // pred_check_branch
        %316 = sbr.rel (%p314) target = $region28
      $region27: #{tpu_custom_call.1} parent=5 // pred_region
        // Predicated region
        $region29: #{tpu_custom_call.1} parent=27 // pred_check
          %p317 = pneg %p127
        $region30: #{tpu_custom_call.1} parent=27 // pred_check_branch
          %319 = sbr.rel (%p317) target = $region32
        $region31: #{tpu_custom_call.1} parent=27 // pred_region
          %s320 = sand.u32 %s117, 1
          %s321 = scalar_lea.sflag [#allocation4], %s320
          %s322 = sand.u32 %s117, 1
          %s323 = smul.addr %s322, 16
          %s324 = scalar_lea.vmem [#allocation9], %s323
          %s325 = smul.u32 2, %s38
          %s327 = ssub.s32 256, 256
          %328 = vsyncadd %s321, %s327
          %s329 = smul.addr %s37, 2
          %s330 = sadd.s32 %s325, %s329
          %s331 = smul.addr %s330, 128
          %s332 = scalar_lea.hbm %s3, %s331
          %s333 = sshll.u32 %s324, 4
          %s334 = int_to_ptr.vmem [resolvable:$true] %s333
          %339 = dma.hbm_to_vmem [thread:$0]  %s332, 256, %s334, %s321, 128, 128, 8
        $region32: #{tpu_custom_call.1} parent=27 // pred_fallthru
          _
        // Predicated region
        $region33: #{tpu_custom_call.1} parent=27 // pred_check
          %p340 = pneg %p155
        $region34: #{tpu_custom_call.1} parent=27 // pred_check_branch
          %342 = sbr.rel (%p340) target = $region36
        $region35: #{tpu_custom_call.1} parent=27 // pred_region
          %s343 = sand.u32 %s30, 1
          %s344 = scalar_lea.sflag [#allocation11], %s343
          %s345 = sand.u32 %s145, 1
          %s346 = smul.addr %s345, 16
          %s347 = scalar_lea.vmem [#allocation10], %s346
          %s348 = smul.u32 2, %s38
          %s350 = ssub.s32 256, 256
          %351 = vsyncadd %s344, %s350
          %s352 = smul.addr %s37, 2
          %s353 = sadd.s32 %s348, %s352
          %s354 = smul.addr %s353, 128
          %s355 = scalar_lea.hbm %s4, %s354
          %s356 = sshll.u32 %s347, 4
          %s357 = int_to_ptr.vmem [resolvable:$true] %s356
          %362 = dma.hbm_to_vmem [thread:$0]  %s355, 256, %s357, %s344, 128, 128, 8
        $region36: #{tpu_custom_call.1} parent=27 // pred_fallthru
          _
        // Predicated region
        $region37: #{tpu_custom_call.1} parent=27 // pred_check
          %p363 = pneg %p183
        $region38: #{tpu_custom_call.1} parent=27 // pred_check_branch
          %365 = sbr.rel (%p363) target = $region40
        $region39: #{tpu_custom_call.1} parent=27 // pred_region
          %s366 = sand.u32 %s30, 1
          %s367 = scalar_lea.sflag [#allocation11], %s366
          %s368 = sand.u32 %s173, 1
          %s369 = smul.addr %s368, 16
          %s370 = scalar_lea.vmem [#allocation12], %s369
          %s371 = smul.u32 2, %s38
          %s373 = ssub.s32 256, 256
          %374 = vsyncadd %s367, %s373
          %s375 = smul.addr %s37, 2
          %s376 = sadd.s32 %s371, %s375
          %s377 = smul.addr %s376, 128
          %s378 = scalar_lea.hbm %s5, %s377
          %s379 = sshll.u32 %s370, 4
          %s380 = int_to_ptr.vmem [resolvable:$true] %s379
          %385 = dma.hbm_to_vmem [thread:$0]  %s378, 256, %s380, %s367, 128, 128, 8
        $region40: #{tpu_custom_call.1} parent=27 // pred_fallthru
          _
      $region28: #{tpu_custom_call.1} parent=5 // pred_fallthru
        _
      %p386 = scmp.le.s32.totalorder 1, %s30
      %p387 = scmp.lt.s32.totalorder %s30, 3
      %p388 = pnand %p386, %p387
      %p389 = pneg %p388
      // Predicated region
      $region41: #{tpu_custom_call.1} parent=5 // pred_check
        _
      $region42: #{tpu_custom_call.1} parent=5 // pred_check_branch
        %391 = sbr.rel (%p388) target = $region44
      $region43: #{tpu_custom_call.1} parent=5 // pred_region
        %s392 = ssub.s32 %s30, 1
        // Predicated region
        $region45: #{tpu_custom_call.1} parent=43 // pred_check
          %p393 = pneg %p63
        $region46: #{tpu_custom_call.1} parent=43 // pred_check_branch
          %395 = sbr.rel (%p393) target = $region48
        $region47: #{tpu_custom_call.1} parent=43 // pred_region
          %396 = dma.done [#allocation6], 64
        $region48: #{tpu_custom_call.1} parent=43 // pred_fallthru
          _
        // Predicated region
        $region49: #{tpu_custom_call.1} parent=43 // pred_check
          %p397 = pneg %p84
        $region50: #{tpu_custom_call.1} parent=43 // pred_check_branch
          %399 = sbr.rel (%p397) target = $region52
        $region51: #{tpu_custom_call.1} parent=43 // pred_region
          %400 = dma.done [#allocation8], 64
        $region52: #{tpu_custom_call.1} parent=43 // pred_fallthru
          _
        %s401 = sand.u32 %s120, 1
        %s402 = scalar_lea.sflag [#allocation4], %s401
        %s403 = sand.u32 %s120, 1
        %s404 = smul.addr %s403, 16
        %s405 = scalar_lea.vmem [#allocation9], %s404
        // Predicated region
        $region53: #{tpu_custom_call.1} parent=43 // pred_check
          %p406 = pneg %p133
        $region54: #{tpu_custom_call.1} parent=43 // pred_check_branch
          %408 = sbr.rel (%p406) target = $region56
        $region55: #{tpu_custom_call.1} parent=43 // pred_region
          %409 = dma.done %s402, 256
        $region56: #{tpu_custom_call.1} parent=43 // pred_fallthru
          _
        %s410 = sand.u32 %s35, 1
        %s411 = scalar_lea.sflag [#allocation11], %s410
        %s412 = sand.u32 %s148, 1
        %s413 = smul.addr %s412, 16
        %s414 = scalar_lea.vmem [#allocation10], %s413
        // Predicated region
        $region57: #{tpu_custom_call.1} parent=43 // pred_check
          %p415 = pneg %p161
        $region58: #{tpu_custom_call.1} parent=43 // pred_check_branch
          %417 = sbr.rel (%p415) target = $region60
        $region59: #{tpu_custom_call.1} parent=43 // pred_region
          %418 = dma.done %s411, 256
        $region60: #{tpu_custom_call.1} parent=43 // pred_fallthru
          _
        %s419 = sand.u32 %s35, 1
        %s420 = scalar_lea.sflag [#allocation11], %s419
        %s421 = sand.u32 %s176, 1
        %s422 = smul.addr %s421, 16
        %s423 = scalar_lea.vmem [#allocation12], %s422
        // Predicated region
        $region61: #{tpu_custom_call.1} parent=43 // pred_check
          %p424 = pneg %p189
        $region62: #{tpu_custom_call.1} parent=43 // pred_check_branch
          %426 = sbr.rel (%p424) target = $region64
        $region63: #{tpu_custom_call.1} parent=43 // pred_region
          %427 = dma.done %s420, 256
        $region64: #{tpu_custom_call.1} parent=43 // pred_fallthru
          _
        %428 = sfence
        %p429 = pneg %p63
        %p430 = pneg %p60
        %p431 = pneg %p84
        %p432 = pneg %p81
        %p433 = pneg %p105
        %p434 = pneg %p102
        %s435 = sand.u32 %s120, 1
        %s436 = scalar_lea.sflag [#allocation4], %s435
        %s437 = sand.u32 %s120, 1
        %s438 = smul.addr %s437, 16
        %s439 = scalar_lea.vmem [#allocation9], %s438
        %p440 = pneg %p133
        %p441 = pneg %p130
        %s442 = sand.u32 %s35, 1
        %s443 = scalar_lea.sflag [#allocation11], %s442
        %s444 = sand.u32 %s148, 1
        %s445 = smul.addr %s444, 16
        %s446 = scalar_lea.vmem [#allocation10], %s445
        %p447 = pneg %p161
        %p448 = pneg %p158
        %s449 = sand.u32 %s35, 1
        %s450 = scalar_lea.sflag [#allocation11], %s449
        %s451 = sand.u32 %s176, 1
        %s452 = smul.addr %s451, 16
        %s453 = scalar_lea.vmem [#allocation12], %s452
        %p454 = pneg %p189
        %p455 = pneg %p186
        %p456 = pneg %p217
        %p457 = pneg %p214
        %s458 = sand.u32 %s204, 1
        %s459 = scalar_lea.sflag [#allocation5], %s458
        %s460 = sand.u32 %s204, 1
        %s461 = smul.addr %s460, 16
        %s462 = scalar_lea.vmem [#allocation13], %s461
        %p463 = pneg %p245
        %p464 = pneg %p242
        %s465 = sand.u32 %s35, 1
        %s466 = scalar_lea.sflag [#allocation15], %s465
        %s467 = sand.u32 %s232, 1
        %s468 = smul.addr %s467, 16
        %s469 = scalar_lea.vmem [#allocation14], %s468
        %p470 = pneg %p273
        %p471 = pneg %p270
        %s472 = sand.u32 %s35, 1
        %s473 = scalar_lea.sflag [#allocation15], %s472
        %s474 = sand.u32 %s260, 1
        %s475 = smul.addr %s474, 8
        %s476 = scalar_lea.vmem [#allocation16], %s475
        %s477 = smul.u32 2, %s40
        %s478 = smul.u32 2, %s40
        %s479 = smul.u32 2, %s40
        %s480 = smul.u32 2, %s40
        %s481 = smul.u32 2, %s40
        %s482 = sld [smem:[#allocation3 + %s39]]
        %s483 = sshra.s32 %s39, 7
        %s484 = sand.u32 %s39, 127
        %s485 = sadd.s32 %s483, 1
        %s486 = smul.u32 %s485, 128
        %s487 = sshra.s32 %s39, 7
        %s488 = sand.u32 %s39, 127
        %s489 = sadd.s32 %s486, %s488
        %s490 = sld [smem:[#allocation3 + %s489]]
        %s491 = sadd.s32 %s483, 2
        %s492 = smul.u32 %s491, 128
        %s493 = sadd.s32 %s492, %s488
        %s494 = sld [smem:[#allocation3 + %s493]]
        %v495 = vlaneseq
        %v496 = vshrl.u32 %v495, 7
        %v497 = vadd.s32 %v496, 8
        %s498 = smul.u32 %s40, 16
        %v499 = vstv %s498
        %v500 = vadd.s32 %v496, %v499
        %v501 = vadd.s32 %v497, %v499
        %v502 = vlaneseq
        %v503 = vand.u32 %v502, 127
        %v504 = vmul.u32 %v500, 128
        %v505 = vmul.u32 %v501, 128
        %v506 = vadd.s32 %v504, %v503
        %v507 = vadd.s32 %v505, %v503
        %vm508 = vcmp.lt.s32.totalorder %v506, 2048
        %vm509 = vcmp.lt.s32.totalorder %v507, 2048
        %v510 = vsel %vm508, 1, 0
        %v511 = vsel %vm509, 1, 0
        %v512 = vcvt.s32.f32 %v510
        %v513 = vcvt.s32.f32 %v511
        %v514 = vld [vmem:[%s414] sm:$0xff]
        %v515 = vld [vmem:[%s414 + $0x8] sm:$0xff]
        %v516 = vstv %s482
        %v517 = vmul.f32 %v516, %v514
        %v518 = vmul.f32 %v516, %v515
        %v519 = vld [vmem:[%s423] sm:$0xff]
        %v520 = vld [vmem:[%s423 + $0x8] sm:$0xff]
        %v521 = vstv %s490
        %v522 = vmul.f32 %v521, %v519
        %v523 = vmul.f32 %v521, %v520
        %v524 = vadd.f32 %v517, %v522
        %v525 = vadd.f32 %v518, %v523
        %526 = vst [vmem:[%s462] sm:$0xff] %v524
        %527 = vst [vmem:[%s462 + $0x8] sm:$0xff] %v525
        %s528 = sld [smem:[#allocation2]]
        %v529 = vstv %s528
        %v530 = vadd.f32 %v529, 0.0
        %s531 = sld [smem:[#allocation7]]
        %v532 = vld [vmem:[%s405] sm:$0xff]
        %v533 = vld [vmem:[%s405 + $0x8] sm:$0xff]
        %v534 = vstv %s531
        %v535 = vmul.f32 %v534, %v532
        %v536 = vmul.f32 %v534, %v533
        %v537 = vadd.f32 %v530, %v535
        %v538 = vadd.f32 %v530, %v536
        %s539 = sld [smem:[#allocation7 + $0x80]]
        %v540 = vld [vmem:[%s414] sm:$0xff]
        %v541 = vld [vmem:[%s414 + $0x8] sm:$0xff]
        %v542 = vstv %s539
        %v543 = vmul.f32 %v542, %v540
        %v544 = vmul.f32 %v542, %v541
        %v545 = vadd.f32 %v537, %v543
        %v546 = vadd.f32 %v538, %v544
        %s547 = sld [smem:[#allocation7 + $0x100]]
        %v548 = vstv %s547
        %v549 = vmul.f32 %v548, %v524
        %v550 = vmul.f32 %v548, %v525
        %v551 = vadd.f32 %v545, %v549
        %v552 = vadd.f32 %v546, %v550
        %v553 = vtanh.pop %v551
        %v554 = vtanh.pop %v552
        %v555 = vstv %s494
        %v556 = vadd.f32 %v553, %v555
        %v557 = vadd.f32 %v554, %v555
        %558 = vst [vmem:[%s469] sm:$0xff] %v556
        %559 = vst [vmem:[%s469 + $0x8] sm:$0xff] %v557
        %v560 = vld [vmem:[%s423] sm:$0xff]
        %v561 = vld [vmem:[%s423 + $0x8] sm:$0xff]
        %v562 = vsub.f32 %v560, %v556
        %v563 = vsub.f32 %v561, %v557
        %v564 = vand.u32 2147483647, %v562
        %v565 = vand.u32 2147483647, %v563
        %v566 = vmul.f32 %v564, %v512
        %v567 = vmul.f32 %v565, %v513
        %v568 = vadd.f32 %v566, 0.0
        %v569 = vadd.f32 %v567, 0.0
        %v570 = vadd.f32 %v568, 0.0
        %v571 = vadd.f32 %v570, %v569
        %572 = vst [vmem:[%s476] sm:$0xff] %v571
        %s573 = sand.u32 %s204, 1
        %s574 = scalar_lea.sflag [#allocation5], %s573
        %s575 = sand.u32 %s204, 1
        %s576 = smul.addr %s575, 16
        %s577 = scalar_lea.vmem [#allocation13], %s576
        %s578 = sand.u32 %s35, 1
        %s579 = scalar_lea.sflag [#allocation15], %s578
        %s580 = sand.u32 %s232, 1
        %s581 = smul.addr %s580, 16
        %s582 = scalar_lea.vmem [#allocation14], %s581
        %s583 = sand.u32 %s35, 1
        %s584 = scalar_lea.sflag [#allocation15], %s583
        %s585 = sand.u32 %s260, 1
        %s586 = smul.addr %s585, 8
        %s587 = scalar_lea.vmem [#allocation16], %s586
        // Predicated region
        $region65: #{tpu_custom_call.1} parent=43 // pred_check
          %p588 = pneg %p214
        $region66: #{tpu_custom_call.1} parent=43 // pred_check_branch
          %590 = sbr.rel (%p588) target = $region68
        $region67: #{tpu_custom_call.1} parent=43 // pred_region
          %s591 = smul.u32 2, %s40
          %s593 = ssub.s32 256, 256
          %594 = vsyncadd %s574, %s593
          %s595 = smul.addr %s39, 2
          %s596 = sadd.s32 %s591, %s595
          %s597 = smul.addr %s596, 128
          %s598 = scalar_lea.hbm %s6, %s597
          %s599 = sshll.u32 %s577, 4
          %s600 = int_to_ptr.vmem [resolvable:$true] %s599
          %605 = dma.vmem_to_hbm [thread:$0]  %s600, 256, %s598, %s574, 128, 128, 8
        $region68: #{tpu_custom_call.1} parent=43 // pred_fallthru
          _
        // Predicated region
        $region69: #{tpu_custom_call.1} parent=43 // pred_check
          %p606 = pneg %p242
        $region70: #{tpu_custom_call.1} parent=43 // pred_check_branch
          %608 = sbr.rel (%p606) target = $region72
        $region71: #{tpu_custom_call.1} parent=43 // pred_region
          %s609 = smul.u32 2, %s40
          %s611 = ssub.s32 256, 256
          %612 = vsyncadd %s579, %s611
          %s613 = smul.addr %s39, 2
          %s614 = sadd.s32 %s609, %s613
          %s615 = smul.addr %s614, 128
          %s616 = scalar_lea.hbm %s7, %s615
          %s617 = sshll.u32 %s582, 4
          %s618 = int_to_ptr.vmem [resolvable:$true] %s617
          %623 = dma.vmem_to_hbm [thread:$0]  %s618, 256, %s616, %s579, 128, 128, 8
        $region72: #{tpu_custom_call.1} parent=43 // pred_fallthru
          _
        // Predicated region
        $region73: #{tpu_custom_call.1} parent=43 // pred_check
          %p624 = pneg %p270
        $region74: #{tpu_custom_call.1} parent=43 // pred_check_branch
          %626 = sbr.rel (%p624) target = $region76
        $region75: #{tpu_custom_call.1} parent=43 // pred_region
          %s628 = ssub.s32 128, 128
          %629 = vsyncadd %s584, %s628
          %s630 = sadd.s32 %s40, %s39
          %s631 = smul.addr %s630, 128
          %s632 = scalar_lea.hbm %s8, %s631
          %s634 = sshll.u32 %s587, 4
          %s635 = int_to_ptr.vmem [resolvable:$true] %s634
          %637 = dma.vmem_to_hbm [thread:$0]  %s635, 128, %s632, %s584
        $region76: #{tpu_custom_call.1} parent=43 // pred_fallthru
          _
      $region44: #{tpu_custom_call.1} parent=5 // pred_fallthru
        _
      %p638 = scmp.le.s32.totalorder 2, %s30
      // Predicated region
      $region77: #{tpu_custom_call.1} parent=5 // pred_check
        %p639 = pneg %p638
      $region78: #{tpu_custom_call.1} parent=5 // pred_check_branch
        %641 = sbr.rel (%p639) target = $region80
      $region79: #{tpu_custom_call.1} parent=5 // pred_region
        %s642 = ssub.s32 %s30, 2
        // Predicated region
        $region81: #{tpu_custom_call.1} parent=79 // pred_check
          %p643 = pneg %p220
        $region82: #{tpu_custom_call.1} parent=79 // pred_check_branch
          %645 = sbr.rel (%p643) target = $region84
        $region83: #{tpu_custom_call.1} parent=79 // pred_region
          %s646 = sand.u32 %s205, 1
          %s647 = scalar_lea.sflag [#allocation5], %s646
          %s648 = sand.u32 %s205, 1
          %s649 = smul.addr %s648, 16
          %s650 = scalar_lea.vmem [#allocation13], %s649
          %651 = dma.done %s647, 256
        $region84: #{tpu_custom_call.1} parent=79 // pred_fallthru
          _
        // Predicated region
        $region85: #{tpu_custom_call.1} parent=79 // pred_check
          %p652 = pneg %p248
        $region86: #{tpu_custom_call.1} parent=79 // pred_check_branch
          %654 = sbr.rel (%p652) target = $region88
        $region87: #{tpu_custom_call.1} parent=79 // pred_region
          %s655 = sand.u32 %s36, 1
          %s656 = scalar_lea.sflag [#allocation15], %s655
          %s657 = sand.u32 %s233, 1
          %s658 = smul.addr %s657, 16
          %s659 = scalar_lea.vmem [#allocation14], %s658
          %660 = dma.done %s656, 256
        $region88: #{tpu_custom_call.1} parent=79 // pred_fallthru
          _
        // Predicated region
        $region89: #{tpu_custom_call.1} parent=79 // pred_check
          %p661 = pneg %p276
        $region90: #{tpu_custom_call.1} parent=79 // pred_check_branch
          %663 = sbr.rel (%p661) target = $region92
        $region91: #{tpu_custom_call.1} parent=79 // pred_region
          %s664 = sand.u32 %s36, 1
          %s665 = scalar_lea.sflag [#allocation15], %s664
          %s666 = sand.u32 %s261, 1
          %s667 = smul.addr %s666, 8
          %s668 = scalar_lea.vmem [#allocation16], %s667
          %669 = dma.done %s665, 128
        $region92: #{tpu_custom_call.1} parent=79 // pred_fallthru
          _
      $region80: #{tpu_custom_call.1} parent=5 // pred_fallthru
        _
    $region6: #{tpu_custom_call.1} parent=1 // loop_footer
      %s34 = sadd.s32 1, %s30
    $region7: #{tpu_custom_call.1} parent=1 // loop_footer_branch
      %29 = sbr.rel target = $region3
    $region8: #{tpu_custom_call.1} parent=1 // loop_exit
      _
    %670 = vsyncpa [#allocation4], 1
    %s671 = scalar_lea.sflag [#allocation4], 1
    %672 = vsyncpa %s671, 1
    %673 = vsyncpa [#allocation11], 1
    %s674 = scalar_lea.sflag [#allocation11], 1
    %675 = vsyncpa %s674, 1
    %676 = vsyncpa [#allocation5], 1
    %s677 = scalar_lea.sflag [#allocation5], 1
    %678 = vsyncpa %s677, 1
    %679 = vsyncpa [#allocation15], 1
    %s680 = scalar_lea.sflag [#allocation15], 1
    %681 = vsyncpa %s680, 1
    %682 = vsyncpa [#allocation6], 1
    %s683 = scalar_lea.sflag [#allocation6], 1
    %684 = vsyncpa %s683, 1
    %685 = vsyncpa [#allocation8], 1

</llo_original>
